<compile_context>
chip_gen: v5e
topology: v5e:2x2
jax: 0.10.0
libtpu: 0.0.40
codegen_flags: <defaults>
</compile_context>

<pallas_src>
import functools

import jax
import jax.numpy as jnp
import numpy as np
from jax.experimental import pallas as pl
from jax.experimental.pallas import tpu as pltpu


def _contrastive_kernel(sum_ref, feat_ref, pos_ref, neg_ref, out_ref, *,
                        loss_name, inv_size_blocks):
    feat = feat_ref[...]                   # (tb, F)        native dtype
    pos = pos_ref[...]                     # (tb, S, F)
    neg = neg_ref[...]                     # (tb, N*S, F)
    sum_mat = sum_ref[...]                 # (N*S, N) f32 group-sum matrix
    tb = feat.shape[0]
    m = neg.shape[1]
    n_neg = sum_mat.shape[1]

    featq = feat[:, None, :]               # (tb, 1, F)

    # f(x)^T mean_s f(x^+): batched MXU contraction over F (f32 acc), then a lane
    # reduce over the S block-samples with the 1/S mean folded in as a scalar.
    pos_scores = jnp.einsum('bqf,bsf->bqs', featq, pos,
                            preferred_element_type=jnp.float32)        # (tb, 1, S)
    fxfx_pos = jnp.sum(pos_scores, axis=2) * inv_size_blocks           # (tb, 1)

    # f(x)^T f_s(x^-) for every (negative, block-sample) pair: batched MXU
    # contraction over F with f32 accumulation.
    neg_scores = jnp.einsum('bqf,bmf->bqm', featq, neg,
                            preferred_element_type=jnp.float32)        # (tb, 1, N*S)
    neg_scores = neg_scores.reshape(tb, m)                             # (tb, N*S)
    # Block-mean over S via a tiny constant matmul (avoids replicating the feature
    # S times and avoids any minor-dim reshape of the score layout).
    fxfx_negs = jnp.dot(neg_scores, sum_mat,
                        preferred_element_type=jnp.float32) * inv_size_blocks  # (tb, N)

    x = fxfx_pos - fxfx_negs                                           # (tb, N)

    if loss_name == 'hinge':
        per = jnp.maximum(0.0, 1.0 + jnp.max(-x, axis=1, keepdims=True))
    elif loss_name == 'logistic':
        per = jnp.log2(
            1.0 + jnp.sum(jnp.exp(jnp.minimum(-x, 64.0)), axis=1, keepdims=True))
    elif loss_name == 'zero-one':
        per = jnp.sum((x <= 0.0).astype(jnp.float32), axis=1,
                      keepdims=True) * (1.0 / n_neg)
    else:
        raise ValueError(loss_name)

    out_ref[...] = per.astype(out_ref.dtype)                           # (tb, 1)


def _vmem_capacity_bytes():
    """Per-TensorCore VMEM capacity; conservative fallback if the query fails."""
    try:
        info = pltpu.get_tpu_info()
        cap = getattr(info, 'vmem_capacity_bytes', None)
        if cap:
            return int(cap)
    except Exception:
        pass
    return 64 * 1024 * 1024        # assume v7x-sized VMEM when unknown


def _choose_tile_b(batch, per_sample_bytes, itemsize, target_bytes):
    """Sublane-aligned batch tile whose (double-buffered) inputs fit the VMEM budget."""
    align = 8 * max(1, 4 // int(itemsize))      # f32: 8, bf16/f16: 16, int8/fp8: 32
    if batch <= align:
        return batch                            # single block equal to the full dim
    t = int(target_bytes // max(1, per_sample_bytes))
    if t >= batch:
        # Whole batch fits comfortably; still emit >= 2 grid blocks so the "parallel"
        # axis can shard across both v7x TensorCores instead of idling one.
        half = -(-batch // 2)
        return min(batch, -(-half // align) * align)
    return max(align, (t // align) * align)


def contrastive_loss(feature, positive_feature, negative_features,
                     loss_name='hinge', reduction='mean', tile_b=None,
                     input_dtype=None):
    """Pallas equivalent of ContrastiveLoss(loss_name)(feature, pos, neg, reduction).

    input_dtype: optional narrower dtype (e.g. jnp.bfloat16) for the streamed inputs;
    MXU accumulation stays f32.  Default keeps the original dtype (exact numerics).
    """
    assert loss_name in ('hinge', 'logistic', 'zero-one')
    B, F = feature.shape
    _, S, _ = positive_feature.shape
    _, N, _, _ = negative_features.shape
    M = N * S

    if input_dtype is not None:
        feature = feature.astype(input_dtype)
        positive_feature = positive_feature.astype(input_dtype)
        negative_features = negative_features.astype(input_dtype)

    # Contiguous row-major reshape only — no HBM copy of the dominant tensor.
    neg_flat = negative_features.reshape(B, M, F)          # (B, N*S, F), m = n*S + s

    # Tiny constant group-sum matrix: sum_mat[m, n] = 1 iff m // S == n.
    sum_mat = jnp.asarray(np.repeat(np.eye(N, dtype=np.float32), S, axis=0))  # (M, N)

    itemsize = jnp.dtype(negative_features.dtype).itemsize
    per_sample_bytes = (M * F + S * F + F) * itemsize

    # Generation-aware tile / VMEM budget (128 MiB parts: v5e/v6e; 64 MiB: v7x).
    vmem_cap = _vmem_capacity_bytes()
    if vmem_cap >= 100 * 1024 * 1024:
        target_bytes, vmem_limit, vmem_hard_cap = 14 << 20, 80 << 20, 100 << 20
    else:
        target_bytes, vmem_limit, vmem_hard_cap = 8 << 20, 32 << 20, 48 << 20

    if tile_b is None:
        tile_b = _choose_tile_b(B, per_sample_bytes, itemsize, target_bytes)
    tile_b = int(min(tile_b, B))
    if tile_b < B:
        tile_b = max(8, (tile_b // 8) * 8)      # sublane-aligned block
    num_blocks = pl.cdiv(B, tile_b)             # partial last block handled by Pallas

    # Make sure the double-buffered tiles (plus f32 temporaries) fit the scoped limit.
    needed = 2 * tile_b * per_sample_bytes + (6 << 20)
    vmem_limit = int(min(vmem_hard_cap, max(vmem_limit, needed)))
    # TODO(synk): for extreme per-sample sizes (N*S*F so large that even an 8-row tile
    # exceeds VMEM), add a second "arbitrary" grid axis over N with streaming
    # max / sum-exp / count accumulators instead of raising the limit.

    kernel = functools.partial(_contrastive_kernel, loss_name=loss_name,
                               inv_size_blocks=1.0 / S)

    per_sample = pl.pallas_call(
        kernel,
        out_shape=jax.ShapeDtypeStruct((B, 1), jnp.float32),
        grid_spec=pltpu.PrefetchScalarGridSpec(
            num_scalar_prefetch=0,
            grid=(num_blocks,),
            in_specs=[
                pl.BlockSpec((M, N), lambda i: (0, 0)),             # group-sum matrix
                pl.BlockSpec((tile_b, F), lambda i: (i, 0)),        # feature
                pl.BlockSpec((tile_b, S, F), lambda i: (i, 0, 0)),  # positives
                pl.BlockSpec((tile_b, M, F), lambda i: (i, 0, 0)),  # negatives
            ],
            out_specs=pl.BlockSpec((tile_b, 1), lambda i: (i, 0)),
        ),
        compiler_params=pltpu.CompilerParams(
            dimension_semantics=("parallel",),      # shard batch blocks across TCs
            vmem_limit_bytes=vmem_limit,
        ),
        cost_estimate=pl.CostEstimate(
            flops=2 * B * M * F + 2 * B * S * F + 2 * B * M * N,
            transcendentals=B * N if loss_name == 'logistic' else 0,
            bytes_accessed=itemsize * (B * M * F + B * S * F + B * F)
                           + 4 * (M * N + B),
        ),
    )(sum_mat, feature, positive_feature, neg_flat)

    per_sample = per_sample[:, 0]                 # exact (B,) per-sample losses
    if reduction == 'mean':
        return jnp.mean(per_sample)
    elif reduction == 'sum':
        return jnp.sum(per_sample)
    elif reduction == 'none':
        return per_sample
    else:
        raise ValueError(reduction + ' is not valid')


def _reference(feature, positive_feature, negative_features, loss_name,
               reduction='mean'):
    """Pure-JAX reference mirroring the PyTorch module exactly."""
    pos_mean = jnp.mean(positive_feature, axis=1)
    neg_mean = jnp.mean(negative_features, axis=2)
    fxfx_pos = jnp.sum(feature * pos_mean, axis=1, keepdims=True)
    fxfx_negs = jnp.sum(feature[:, None, :] * neg_mean, axis=2)
    x = fxfx_pos - fxfx_negs
    if loss_name == 'hinge':
        per = jnp.maximum(0.0, 1.0 + jnp.max(-x, axis=1))
    elif loss_name == 'logistic':
        per = jnp.log2(1.0 + jnp.sum(jnp.exp(jnp.minimum(-x, 64.0)), axis=1))
    else:  # zero-one
        per = jnp.sum((x <= 0.0).astype(jnp.float32), axis=1) / x.shape[1]
    if reduction == 'mean':
        return jnp.mean(per)
    if reduction == 'sum':
        return jnp.sum(per)
    return per


if __name__ == "__main__":
    key = jax.random.PRNGKey(0)

    def make_inputs(k, B, F, S, N):
        k1, k2, k3 = jax.random.split(k, 3)
        return (jax.random.normal(k1, (B, F), dtype=jnp.float32),
                jax.random.normal(k2, (B, S, F), dtype=jnp.float32),
                jax.random.normal(k3, (B, N, S, F), dtype=jnp.float32))

    cases = [
        # (B, F, S, N, forced tile_b)
        (2, 32, 4, 8, None),    # tiny batch: single block equal to the full dim
        (20, 32, 4, 8, 8),      # forced tile -> multi-block grid + partial last block
        (20, 32, 4, 8, None),   # auto tile -> >=2 blocks (megacore path), partial block
    ]
    subkeys = jax.random.split(key, len(cases))
    for (B, F, S, N, tb), sub in zip(cases, subkeys):
        feature, positive_feature, negative_features = make_inputs(sub, B, F, S, N)
        for loss_name in ('hinge', 'logistic', 'zero-one'):
            for reduction in ('mean', 'sum', 'none'):
                out = contrastive_loss(feature, positive_feature,
                                       negative_features, loss_name=loss_name,
                                       reduction=reduction, tile_b=tb)
                out = jax.block_until_ready(out)
                ref = _reference(feature, positive_feature, negative_features,
                                 loss_name, reduction)
                ref = jax.block_until_ready(ref)
                np.testing.assert_allclose(
                    np.asarray(out), np.asarray(ref), rtol=2e-5, atol=2e-5,
                    err_msg=f"{loss_name}/{reduction} B={B} tile_b={tb}")

    # Optional bandwidth saver: bf16 streamed inputs, f32 accumulation (loose check).
    feature, positive_feature, negative_features = make_inputs(subkeys[1], 20, 32, 4, 8)
    out = contrastive_loss(feature, positive_feature, negative_features,
                           loss_name='logistic', reduction='mean',
                           input_dtype=jnp.bfloat16)
    out = jax.block_until_ready(out)
    ref = _reference(feature, positive_feature, negative_features, 'logistic', 'mean')
    np.testing.assert_allclose(np.asarray(out), np.asarray(ref), rtol=1e-1, atol=1e-1)

    print("KERNEL_OK")
</pallas_src>

<mosaic_0001>
module attributes {stable_mosaic.version = 11 : i64} {
  func.func @_contrastive_kernel(%arg0: i32, %arg1: memref<32x8xf32, #tpu.memory_space<vmem>>, %arg2: memref<2x32xf32, #tpu.memory_space<vmem>>, %arg3: memref<2x4x32xf32, #tpu.memory_space<vmem>>, %arg4: memref<2x32x32xf32, #tpu.memory_space<vmem>>, %arg5: memref<2x1xf32, #tpu.memory_space<vmem>>) attributes {dimension_semantics = [#tpu.dimension_semantics<parallel>], iteration_bounds = array<i64: 1>, scalar_prefetch = 0 : i64, scratch_operands = 0 : i64, tpu.core_type = #tpu.core_type<tc>, window_params = [{pipeline_mode = #tpu.pipeline_mode<synchronous>, transform_indices = @transform_0, window_bounds = array<i64: 32, 8>}, {transform_indices = @transform_1, window_bounds = array<i64: 2, 32>}, {transform_indices = @transform_2, window_bounds = array<i64: 2, 4, 32>}, {transform_indices = @transform_3, window_bounds = array<i64: 2, 32, 32>}, {transform_indices = @transform_4, window_bounds = array<i64: 2, 1>}]} {
    %c0 = arith.constant 0 : index
    %c0_0 = arith.constant 0 : index
    %0 = vector.load %arg2[%c0, %c0_0] : memref<2x32xf32, #tpu.memory_space<vmem>>, vector<2x32xf32>
    %c0_1 = arith.constant 0 : index
    %c0_2 = arith.constant 0 : index
    %c0_3 = arith.constant 0 : index
    %1 = vector.load %arg3[%c0_1, %c0_2, %c0_3] : memref<2x4x32xf32, #tpu.memory_space<vmem>>, vector<2x4x32xf32>
    %c0_4 = arith.constant 0 : index
    %c0_5 = arith.constant 0 : index
    %c0_6 = arith.constant 0 : index
    %2 = vector.load %arg4[%c0_4, %c0_5, %c0_6] : memref<2x32x32xf32, #tpu.memory_space<vmem>>, vector<2x32x32xf32>
    %c0_7 = arith.constant 0 : index
    %c0_8 = arith.constant 0 : index
    %3 = vector.load %arg1[%c0_7, %c0_8] : memref<32x8xf32, #tpu.memory_space<vmem>>, vector<32x8xf32>
    %4 = vector.shape_cast %0 : vector<2x32xf32> to vector<2x1x32xf32>
    "tpu.trace_start"() <{level = 10 : i32, message = "bqf,bsf->bqs"}> : () -> ()
    %cst = arith.constant dense<0.000000e+00> : vector<2x1x4xf32>
    %5 = tpu.matmul %4, %1, %cst {dimension_numbers = #tpu.dot_dimension_numbers<[2], [2], [1], [1], [0, 0, 0, 1, 1, 1], [0], [0]>} : vector<2x1x32xf32>, vector<2x4x32xf32>, vector<2x1x4xf32> -> vector<2x1x4xf32>
    "tpu.trace_stop"() : () -> ()
    %cst_9 = arith.constant dense<0.000000e+00> : vector<2x1xf32>
    %6 = vector.multi_reduction <add>, %5, %cst_9 [2] : vector<2x1x4xf32> to vector<2x1xf32>
    %cst_10 = arith.constant 2.500000e-01 : f32
    %7 = vector.broadcast %cst_10 : f32 to vector<2x1xf32>
    %8 = arith.mulf %6, %7 : vector<2x1xf32>
    "tpu.trace_start"() <{level = 10 : i32, message = "bqf,bmf->bqm"}> : () -> ()
    %cst_11 = arith.constant dense<0.000000e+00> : vector<2x1x32xf32>
    %9 = tpu.matmul %4, %2, %cst_11 {dimension_numbers = #tpu.dot_dimension_numbers<[2], [2], [1], [1], [0, 0, 0, 1, 1, 1], [0], [0]>} : vector<2x1x32xf32>, vector<2x32x32xf32>, vector<2x1x32xf32> -> vector<2x1x32xf32>
    "tpu.trace_stop"() : () -> ()
    %10 = vector.shape_cast %9 : vector<2x1x32xf32> to vector<2x32xf32>
    %cst_12 = arith.constant dense<0.000000e+00> : vector<2x8xf32>
    %11 = tpu.matmul %10, %3, %cst_12 {dimension_numbers = #tpu.dot_dimension_numbers<[1], [0], [0], [1], [0, 0, 1, 1], [], []>} : vector<2x32xf32>, vector<32x8xf32>, vector<2x8xf32> -> vector<2x8xf32>
    %cst_13 = arith.constant 2.500000e-01 : f32
    %12 = vector.broadcast %cst_13 : f32 to vector<2x8xf32>
    %13 = arith.mulf %11, %12 : vector<2x8xf32>
    %14 = vector.broadcast %8 : vector<2x1xf32> to vector<2x8xf32>
    %15 = arith.subf %14, %13 : vector<2x8xf32>
    %cst_14 = arith.constant 0.000000e+00 : f32
    %16 = vector.broadcast %cst_14 : f32 to vector<2x8xf32>
    %17 = arith.subf %16, %15 : vector<2x8xf32>
    %cst_15 = arith.constant dense<0xFF800000> : vector<2xf32>
    %18 = vector.multi_reduction <maximumf>, %17, %cst_15 [1] : vector<2x8xf32> to vector<2xf32>
    %19 = vector.shape_cast %18 : vector<2xf32> to vector<2x1xf32>
    %cst_16 = arith.constant 1.000000e+00 : f32
    %20 = vector.broadcast %cst_16 : f32 to vector<2x1xf32>
    %21 = arith.addf %20, %19 : vector<2x1xf32>
    %cst_17 = arith.constant 0.000000e+00 : f32
    %22 = vector.broadcast %cst_17 : f32 to vector<2x1xf32>
    %23 = arith.maximumf %22, %21 : vector<2x1xf32>
    %c0_18 = arith.constant 0 : index
    %c0_19 = arith.constant 0 : index
    %24 = vector.load %arg5[%c0_18, %c0_19] : memref<2x1xf32, #tpu.memory_space<vmem>>, vector<2x1xf32>
    tpu.vector_store %arg5[%c0_18, %c0_19], %23 {strides = array<i32>} : memref<2x1xf32, #tpu.memory_space<vmem>>, vector<2x1xf32>,
    return
  }
  func.func @transform_0(%arg0: i32) -> (i32, i32) {
    %c0_i32 = arith.constant 0 : i32
    %c0_i32_0 = arith.constant 0 : i32
    %c0_i32_1 = arith.constant 0 : i32
    return %c0_i32, %c0_i32_0 : i32, i32
  }
  func.func @transform_1(%arg0: i32) -> (i32, i32) {
    %c0_i32 = arith.constant 0 : i32
    %c0_i32_0 = arith.constant 0 : i32
    return %arg0, %c0_i32 : i32, i32
  }
  func.func @transform_2(%arg0: i32) -> (i32, i32, i32) {
    %c0_i32 = arith.constant 0 : i32
    %c0_i32_0 = arith.constant 0 : i32
    %c0_i32_1 = arith.constant 0 : i32
    return %arg0, %c0_i32, %c0_i32_0 : i32, i32, i32
  }
  func.func @transform_3(%arg0: i32) -> (i32, i32, i32) {
    %c0_i32 = arith.constant 0 : i32
    %c0_i32_0 = arith.constant 0 : i32
    %c0_i32_1 = arith.constant 0 : i32
    return %arg0, %c0_i32, %c0_i32_0 : i32, i32, i32
  }
  func.func @transform_4(%arg0: i32) -> (i32, i32) {
    %c0_i32 = arith.constant 0 : i32
    %c0_i32_0 = arith.constant 0 : i32
    return %arg0, %c0_i32 : i32, i32
  }
}

</mosaic_0001>

<llo_original>
// kernel: tpu_custom_call.1
$region0: #{tpu_custom_call.1}
  #allocation0 [shape = 'u32[]', space=smem, size = 0x4, offset = 0x4, fixed_abs, tag = 'smem constant byte address 0x4 - core index']
  #allocation1 [shape = 'u32[72,128]{1,0:T(1,128)}', space=vmem, size = 0x9000, scoped, tag = 'internal scratch']
  %s0 = inlined_call_operand.vmem [shape: f32[32,8], index: 0, kind: input, shape index: {}]
  %s1 = inlined_call_operand.vmem [shape: f32[2,32], index: 1, kind: input, shape index: {}]
  %s2 = inlined_call_operand.vmem [shape: f32[2,4,32], index: 2, kind: input, shape index: {}]
  %s3 = inlined_call_operand.hbm [shape: f32[2,32,32], index: 3, kind: input, shape index: {}]
  %s4 = inlined_call_operand.vmem [shape: f32[2,1], index: 4, kind: output, shape index: {}]
  %s5 = sld [smem:[#allocation0]]
  $region30: #{tpu_custom_call.1} parent=0
    _
  %s7 = ssub.s32 1, %s5
  %s8 = scalar_select 0, %s7, %s5
  $region1: #{tpu_custom_call.1} parent=0
    #allocation2 [shape = 'u8[32768]{0}', space=vmem, size = 0x8000, scoped, tag = 'input window, operand 3, single buffered']
    #allocation3 [shape = 's32[1]{0}', space=sflag, size = 0x4, scoped, tag = 'scoped memory for tpu_custom_call.1']
    %9 = vsyncpa [#allocation3], 0
    // Predicated region
    $region2: #{tpu_custom_call.1} parent=1 // pred_check
      _
    $region3: #{tpu_custom_call.1} parent=1 // pred_check_branch
      %11 = sbr.rel (0) target = $region5
    $region4: #{tpu_custom_call.1} parent=1 // pred_region
      _
    $region5: #{tpu_custom_call.1} parent=1 // pred_fallthru
      _
    // Predicated region
    $region6: #{tpu_custom_call.1} parent=1 // pred_check
      _
    $region7: #{tpu_custom_call.1} parent=1 // pred_check_branch
      %13 = sbr.rel (0) target = $region9
    $region8: #{tpu_custom_call.1} parent=1 // pred_region
      _
    $region9: #{tpu_custom_call.1} parent=1 // pred_fallthru
      _
    // Predicated region
    $region10: #{tpu_custom_call.1} parent=1 // pred_check
      _
    $region11: #{tpu_custom_call.1} parent=1 // pred_check_branch
      %15 = sbr.rel (0) target = $region13
    $region12: #{tpu_custom_call.1} parent=1 // pred_region
      _
    $region13: #{tpu_custom_call.1} parent=1 // pred_fallthru
      _
    // Predicated region
    $region14: #{tpu_custom_call.1} parent=1 // pred_check
      _
    $region15: #{tpu_custom_call.1} parent=1 // pred_check_branch
      %17 = sbr.rel (0) target = $region17
    $region16: #{tpu_custom_call.1} parent=1 // pred_region
      %19 = vsyncadd [#allocation3], 0
      %s20 = sshll.u32 %s3, 4
      %s21 = int_to_ptr.hbm [resolvable:$true] %s20
      %s22 = sshll.u32 [#allocation2], 4
      %s23 = int_to_ptr.vmem [resolvable:$true] %s22
      %28 = dma.hbm_to_vmem [thread:$0]  %s21, 1024, %s23, [#allocation3], 128, 128, 8
    $region17: #{tpu_custom_call.1} parent=1 // pred_fallthru
      _
    // Predicated region
    $region18: #{tpu_custom_call.1} parent=1 // pred_check
      _
    $region19: #{tpu_custom_call.1} parent=1 // pred_check_branch
      %30 = sbr.rel (0) target = $region21
    $region20: #{tpu_custom_call.1} parent=1 // pred_region
      %32 = dma.done [#allocation3], 1024
    $region21: #{tpu_custom_call.1} parent=1 // pred_fallthru
      _
    %v33 = vld [vmem:[%s1] sm:$0x3]
    %v34 = vld [vmem:[%s2] sm:$0xf]
    %v35 = vld [vmem:[%s2 + $0x4] sm:$0xf]
    %v36 = vld [vmem:[#allocation2] sm:$0xff]
    %v37 = vld [vmem:[#allocation2 + $0x8] sm:$0xff]
    %v38 = vld [vmem:[#allocation2 + $0x10] sm:$0xff]
    %v39 = vld [vmem:[#allocation2 + $0x18] sm:$0xff]
    %v40 = vld [vmem:[#allocation2 + $0x20] sm:$0xff]
    %v41 = vld [vmem:[#allocation2 + $0x28] sm:$0xff]
    %v42 = vld [vmem:[#allocation2 + $0x30] sm:$0xff]
    %v43 = vld [vmem:[#allocation2 + $0x38] sm:$0xff]
    %v44 = vld [vmem:[%s0] sm:$0xff]
    %v45 = vld [vmem:[%s0 + $0x8] sm:$0xff]
    %v46 = vld [vmem:[%s0 + $0x10] sm:$0xff]
    %v47 = vld [vmem:[%s0 + $0x18] sm:$0xff]
    %v49 = vrot.slane %v33, 1
    %vm50 = vcmask 261120
    %v51 = vsel %vm50, %v33, 0
    %v54 = vsel %vm50, %v34, 0
    %56 = vmatpush.xpose.msra.mxu0 0.0
    %57 = vmatpush.xpose.msra.mxu0 0.0
    %58 = vmatpush.xpose.msra.mxu0 0.0
    %59 = vmatpush.xpose.msra.mxu0 0.0
    %60 = vmatpush.xpose.msra.mxu0 0.0
    %61 = vmatpush.xpose.msra.mxu0 0.0
    %62 = vmatpush.xpose.msra.mxu0 0.0
    %63 = vmatpush.xpose.msra.mxu0 0.0
    %64 = vmatpush.xpose.msra.mxu0 0.0
    %65 = vmatpush.xpose.msra.mxu0 0.0
    %66 = vmatpush.xpose.msra.mxu0 0.0
    %67 = vmatpush.xpose.msra.mxu0 0.0
    %68 = vmatpush.xpose.msra.mxu0 0.0
    %69 = vmatpush.xpose.msra.mxu0 0.0
    %70 = vmatpush.xpose.msra.mxu0 0.0
    %71 = vmatpush.xpose.msra.mxu0 %v54
    %72 = vmatmul.f32.gmra.mxu0 %v51
    %v73 = vpop.f32.mrf.mxu0
    %v74 = vadd.f32 0.0, %v73
    %75 = vdwg.mxu0
    %v76 = vsel %vm50, %v49, 0
    %v79 = vsel %vm50, %v35, 0
    %81 = vmatpush.xpose.msra.mxu0 0.0
    %82 = vmatpush.xpose.msra.mxu0 0.0
    %83 = vmatpush.xpose.msra.mxu0 0.0
    %84 = vmatpush.xpose.msra.mxu0 0.0
    %85 = vmatpush.xpose.msra.mxu0 0.0
    %86 = vmatpush.xpose.msra.mxu0 0.0
    %87 = vmatpush.xpose.msra.mxu0 0.0
    %88 = vmatpush.xpose.msra.mxu0 0.0
    %89 = vmatpush.xpose.msra.mxu0 0.0
    %90 = vmatpush.xpose.msra.mxu0 0.0
    %91 = vmatpush.xpose.msra.mxu0 0.0
    %92 = vmatpush.xpose.msra.mxu0 0.0
    %93 = vmatpush.xpose.msra.mxu0 0.0
    %94 = vmatpush.xpose.msra.mxu0 0.0
    %95 = vmatpush.xpose.msra.mxu0 0.0
    %96 = vmatpush.xpose.msra.mxu0 %v79
    %97 = vmatmul.f32.gmra.mxu0 %v76
    %v98 = vpop.f32.mrf.mxu0
    %v99 = vadd.f32 0.0, %v98
    %100 = vdwg.mxu0
    %vm101 = vcmask 24576
    %v102 = vsel %vm101, %v74, 0.0
    %103 = vadd.xlane.f32.xlu0 %v102
    %v104 = vpop.xlane.xlu0 %103
    %v105 = vsel %vm101, %v99, 0.0
    %106 = vadd.xlane.f32.xlu0 %v105
    %v107 = vpop.xlane.xlu0 %106
    %v108 = vmul.f32 %v104, 0.25
    %v109 = vmul.f32 %v107, 0.25
    %v111 = vsel %vm50, %v36, 0
    %v114 = vsel %vm50, %v37, 0
    %v117 = vsel %vm50, %v38, 0
    %v120 = vsel %vm50, %v39, 0
    %122 = vmatpush.xpose.msra.mxu0 0.0
    %123 = vmatpush.xpose.msra.mxu0 0.0
    %124 = vmatpush.xpose.msra.mxu0 0.0
    %125 = vmatpush.xpose.msra.mxu0 0.0
    %126 = vmatpush.xpose.msra.mxu0 0.0
    %127 = vmatpush.xpose.msra.mxu0 0.0
    %128 = vmatpush.xpose.msra.mxu0 0.0
    %129 = vmatpush.xpose.msra.mxu0 0.0
    %130 = vmatpush.xpose.msra.mxu0 0.0
    %131 = vmatpush.xpose.msra.mxu0 0.0
    %132 = vmatpush.xpose.msra.mxu0 0.0
    %133 = vmatpush.xpose.msra.mxu0 0.0
    %134 = vmatpush.xpose.msra.mxu0 %v120
    %135 = vmatpush.xpose.msra.mxu0 %v117
    %136 = vmatpush.xpose.msra.mxu0 %v114
    %137 = vmatpush.xpose.msra.mxu0 %v111
    %138 = vmatmul.f32.gmra.mxu0 %v51
    %v139 = vpop.f32.mrf.mxu0
    %v140 = vadd.f32 0.0, %v139
    %141 = vdwg.mxu0
    %v143 = vsel %vm50, %v40, 0
    %v146 = vsel %vm50, %v41, 0
    %v149 = vsel %vm50, %v42, 0
    %v152 = vsel %vm50, %v43, 0
    %154 = vmatpush.xpose.msra.mxu0 0.0
    %155 = vmatpush.xpose.msra.mxu0 0.0
    %156 = vmatpush.xpose.msra.mxu0 0.0
    %157 = vmatpush.xpose.msra.mxu0 0.0
    %158 = vmatpush.xpose.msra.mxu0 0.0
    %159 = vmatpush.xpose.msra.mxu0 0.0
    %160 = vmatpush.xpose.msra.mxu0 0.0
    %161 = vmatpush.xpose.msra.mxu0 0.0
    %162 = vmatpush.xpose.msra.mxu0 0.0
    %163 = vmatpush.xpose.msra.mxu0 0.0
    %164 = vmatpush.xpose.msra.mxu0 0.0
    %165 = vmatpush.xpose.msra.mxu0 0.0
    %166 = vmatpush.xpose.msra.mxu0 %v152
    %167 = vmatpush.xpose.msra.mxu0 %v149
    %168 = vmatpush.xpose.msra.mxu0 %v146
    %169 = vmatpush.xpose.msra.mxu0 %v143
    %170 = vmatmul.f32.gmra.mxu0 %v76
    %v171 = vpop.f32.mrf.mxu0
    %v172 = vadd.f32 0.0, %v171
    %173 = vdwg.mxu0
    %v176 = vrot.slane %v172, 7
    %vm177 = vcmask 1041409
    %v178 = vsel %vm177, %v176, %v140
    %v179 = vsel %vm50, %v178, 0
    %181 = vmatpush.msra.mxu0 0.0
    %182 = vmatpush.msra.mxu0 0.0
    %183 = vmatpush.msra.mxu0 0.0
    %184 = vmatpush.msra.mxu0 0.0
    %185 = vmatpush.msra.mxu0 0.0
    %186 = vmatpush.msra.mxu0 0.0
    %187 = vmatpush.msra.mxu0 0.0
    %188 = vmatpush.msra.mxu0 0.0
    %189 = vmatpush.msra.mxu0 0.0
    %190 = vmatpush.msra.mxu0 0.0
    %191 = vmatpush.msra.mxu0 0.0
    %192 = vmatpush.msra.mxu0 0.0
    %193 = vmatpush.msra.mxu0 %v47
    %194 = vmatpush.msra.mxu0 %v46
    %195 = vmatpush.msra.mxu0 %v45
    %196 = vmatpush.msra.mxu0 %v44
    %197 = vmatmul.f32.gmra.mxu0 %v179
    %v198 = vpop.f32.mrf.mxu0
    %v199 = vadd.f32 0.0, %v198
    %200 = vdwg.mxu0
    %v201 = vmul.f32 %v199, 0.25
    %v202 = vperm.slane %v108, 0
    %v203 = vperm.slane %v109, 0
    %v205 = vperm.slane %v201, 0
    %v206 = vlaneseq
    %v207 = vshrl.u32 %v206, 7
    %209 = vset.pattern.permute.xlu0 %v207
    %210 = vperm.xlu0 %209, %v205
    %v211 = vpop.permute.xlu0 %210
    %v212 = vperm.slane %v201, 1
    %v213 = vlaneseq
    %v214 = vshrl.u32 %v213, 7
    %216 = vset.pattern.permute.xlu0 %v214
    %217 = vperm.xlu0 %216, %v212
    %v218 = vpop.permute.xlu0 %217
    %v221 = vsub.f32 %v202, %v211
    %v222 = vsub.f32 %v203, %v218
    %v223 = vsub.f32 0.0, %v221
    %v224 = vsub.f32 0.0, %v222
    %227 = vset.pattern.permute.xlu0 0
    %228 = vperm.xlu0 %227, %v223
    %v229 = vpop.permute.xlu0 %228
    %230 = vset.pattern.permute.xlu0 0
    %231 = vperm.xlu0 %230, %v224
    %v232 = vpop.permute.xlu0 %231
    %v233 = vlaneseq
    %v234 = vand.u32 %v233, 127
    %v235 = vperm.slane %v229, %v234
    %v236 = vperm.slane %v232, %v234
    %v237 = vsel %vm177, %v236, %v235
    %vm239 = vcmask 58368
    %v240 = vsel %vm239, %v237, -inf
    %241 = vmax.xlane.f32.xlu0 %v240
    %v242 = vpop.xlane.xlu0 %241
    %v243 = vadd.f32 %v242, 1.0
    %v244 = vmax.f32 %v243, 0.0
    %vm245 = vcmask 1024
    %246 = vst.msk [vmem:[%s4] sm:$0x3] %vm245, %v244
    // Predicated region
    $region22: #{tpu_custom_call.1} parent=1 // pred_check
      _
    $region23: #{tpu_custom_call.1} parent=1 // pred_check_branch
      %248 = sbr.rel (0) target = $region25
    $region24: #{tpu_custom_call.1} parent=1 // pred_region
      _
    $region25: #{tpu_custom_call.1} parent=1 // pred_fallthru
      _
    // Predicated region
    $region26: #{tpu_custom_call.1} parent=1 // pred_check
      _
    $region27: #{tpu_custom_call.1} parent=1 // pred_check_branch
      %250 = sbr.rel (0) target = $region29
    $region28: #{tpu_custom_call.1} parent=1 // pred_region
      _
    $region29: #{tpu_custom_call.1} parent=1 // pred_fallthru
      _
    %251 = vsyncpa [#allocation3], 1

</llo_original>
